<compile_context>
chip_gen: v6e
topology: v6e:2x2x1
jax: 0.10.0
libtpu: 0.0.40
codegen_flags: <defaults>
</compile_context>

<pallas_src>
import jax
import jax.numpy as jnp
from jax import lax
from jax.experimental import pallas as pl
from jax.experimental.pallas import tpu as pltpu


def _round_up(n, m):
    return ((n + m - 1) // m) * m


def _cdiv(a, b):
    return -(-a // b)


def _sublane_multiple(dtype):
    # Native sublane packing: 8 rows for 32-bit, 16 for 16-bit, 32 for 8-bit.
    return max(8, 32 // jnp.dtype(dtype).itemsize)


def _num_tensorcores():
    """Best-effort TensorCore count of the local chip (1 on v5e/v6e, 2 on v7x).
    Only used as a tiling heuristic — any fallback value is still correct."""
    try:
        info = pltpu.get_tpu_info()
        for name in ("num_cores", "core_count", "num_tensorcores",
                     "tensorcore_count"):
            v = getattr(info, name, None)
            if isinstance(v, int) and v > 0:
                return v
    except Exception:
        pass
    try:
        v = getattr(jax.devices()[0], "num_cores", None)
        if isinstance(v, int) and v > 0:
            return v
    except Exception:
        pass
    return 1


def _pick_batch_tile(B, tb, sub, num_cores):
    """Rows per grid step.  Single-TC: one full-batch tile if it fits.
    Multi-TC (v7x): split into an even number of steps so both cores stay
    loaded.  Result is either a sublane multiple or exactly B (full dim)."""
    tb_req = _round_up(min(max(tb, sub), 2048), sub)
    if num_cores >= 2 and B > sub:
        steps = 2 * _cdiv(B, 2 * tb_req)           # even step count
        cand = _round_up(_cdiv(B, steps), sub)
        if cand < B:
            return cand
    if B <= tb_req:
        return B                                    # one block == full batch dim
    return tb_req


def netvlad_kernel(x_ref, w_ref, b_ref, c_ref, out_ref):
    # x: (TB, D), w: (D, Kp) bf16, b: (1, Kp) f32, c: (Kp, D) bf16, out: (TB, D)
    x = x_ref[...]
    x_f32 = x.astype(jnp.float32)
    x_bf16 = x.astype(jnp.bfloat16)

    # logits = x @ W^T + b  -> (TB, Kp); bf16 MXU operands, f32 accumulation.
    # Padded columns carry bias = -1e30 -> exactly zero softmax mass.
    logits = jnp.dot(x_bf16, w_ref[...], preferred_element_type=jnp.float32)
    logits = logits + b_ref[...]

    m = jnp.max(logits, axis=-1, keepdims=True)
    e = jnp.exp(logits - m)                                        # (TB, Kp) f32
    recip = pl.reciprocal(jnp.sum(e, axis=-1, keepdims=True), approx=True)

    # Softmax rows sum to 1, so sum_k a_k * (x - c_k) = x - (e @ C) / sum(e).
    # Running the matmul on the unnormalized exp lets the MXU start as soon as
    # exp finishes (no dependence on the reciprocal).  Padded cluster rows are
    # zero, so padded lanes contribute nothing.
    agg = jnp.dot(e.astype(jnp.bfloat16), c_ref[...],
                  preferred_element_type=jnp.float32)              # (TB, D)
    vlad = x_f32 - recip * agg

    # F.normalize(vlad, dim=-1), eps=1e-12: rsqrt of clamped sum of squares
    # (1e-24 == (1e-12)^2).
    sumsq = jnp.sum(vlad * vlad, axis=-1, keepdims=True)
    vlad = vlad * lax.rsqrt(jnp.maximum(sumsq, 1e-24))

    out_ref[...] = vlad.astype(out_ref.dtype)


def netvlad_forward(x, weight, bias, clusters, *, tb=1024):
    """x: (B, D) features. weight: (K, D) (nn.Linear layout). bias: (K,).
    clusters: (K, D). Returns (B, D) in x.dtype.  (Supply x in bf16 to halve
    the kernel's HBM traffic — output follows x.dtype.)"""
    B, D = x.shape
    K, Dw = weight.shape
    assert Dw == D and clusters.shape == (K, D) and bias.shape == (K,)

    # --- pad the cluster dimension to a lane-dense multiple of 128 ---------
    Kp = max(128, _round_up(K, 128))
    if Kp != K:
        pad = Kp - K
        weight = jnp.concatenate(
            [weight, jnp.zeros((pad, D), weight.dtype)], axis=0)
        bias = jnp.concatenate(
            [bias, jnp.full((pad,), -1e30, bias.dtype)], axis=0)
        clusters = jnp.concatenate(
            [clusters, jnp.zeros((pad, D), clusters.dtype)], axis=0)

    w_t = weight.T.astype(jnp.bfloat16)           # (D, Kp), bf16 MXU operand
    c_bf = clusters.astype(jnp.bfloat16)          # (Kp, D), bf16 MXU operand
    b2 = bias.reshape(1, Kp).astype(jnp.float32)  # (1, Kp), added in f32

    # --- batch tiling: no explicit padding; ragged last block is masked ----
    sub = _sublane_multiple(x.dtype)
    tb_eff = _pick_batch_tile(B, tb, sub, _num_tensorcores())
    grid = (_cdiv(B, tb_eff),)

    itemsize = jnp.dtype(x.dtype).itemsize
    cost = pl.CostEstimate(
        flops=4 * B * D * Kp,                      # two (B,D)x(D/Kp) matmuls
        transcendentals=B * Kp,                    # exp (recip/rsqrt are ~B)
        bytes_accessed=(2 * B * D * itemsize       # x in + vlad out
                        + 2 * D * Kp * 2           # W^T + clusters (bf16)
                        + Kp * 4))                 # bias (f32)

    out = pl.pallas_call(
        netvlad_kernel,
        out_shape=jax.ShapeDtypeStruct((B, D), x.dtype),
        grid_spec=pltpu.PrefetchScalarGridSpec(
            num_scalar_prefetch=0,
            grid=grid,
            in_specs=[
                pl.BlockSpec((tb_eff, D), lambda i: (i, 0)),   # x tile
                pl.BlockSpec((D, Kp), lambda i: (0, 0)),       # W^T (resident)
                pl.BlockSpec((1, Kp), lambda i: (0, 0)),       # bias (resident)
                pl.BlockSpec((Kp, D), lambda i: (0, 0)),       # clusters (res.)
            ],
            out_specs=pl.BlockSpec((tb_eff, D), lambda i: (i, 0)),
        ),
        compiler_params=pltpu.CompilerParams(
            dimension_semantics=("parallel",)),
        cost_estimate=cost,
    )(x, w_t, b2, c_bf)

    return out


def netvlad_reference(x, weight, bias, clusters):
    """Pure-JAX f32 reference matching the PyTorch forward exactly."""
    soft_assign = x @ weight.T + bias
    soft_assign = jax.nn.softmax(soft_assign, axis=-1)
    residuals = x[:, None, :] - clusters[None, :, :]          # (B, K, D)
    vlad = residuals * soft_assign[:, :, None]
    vlad = vlad.sum(axis=1)                                   # (B, D)
    norm = jnp.linalg.norm(vlad, axis=-1, keepdims=True)
    return vlad / jnp.maximum(norm, 1e-12)


if __name__ == "__main__":
    # Module defaults: vlad_clusters=64, dim=128; B=24 exercises the K-padding
    # path and (on 2-TC parts) a 2-step grid with a masked ragged last block.
    K, D, B = 64, 128, 24

    key = jax.random.PRNGKey(0)
    k_x, k_c, k_w, k_b = jax.random.split(key, 4)

    x = jax.random.normal(k_x, (B, D), dtype=jnp.float32)
    clusters = jax.random.normal(k_c, (K, D), dtype=jnp.float32)  # torch.randn
    # nn.Linear(dim, num_clusters): weight (K, D), bias (K,), U(-1/sqrt(D), 1/sqrt(D))
    bound = 1.0 / (D ** 0.5)
    weight = jax.random.uniform(k_w, (K, D), jnp.float32, -bound, bound)
    bias = jax.random.uniform(k_b, (K,), jnp.float32, -bound, bound)

    out = netvlad_forward(x, weight, bias, clusters)
    out = jax.block_until_ready(out)

    ref = netvlad_reference(x, weight, bias, clusters)
    assert out.shape == (B, D)
    # bf16 MXU operands + approx EUP reciprocal -> slightly relaxed tolerance
    # vs. the pure-f32 reference.
    assert jnp.allclose(out, ref, atol=5e-3, rtol=5e-3), (
        f"mismatch vs reference (max abs err {jnp.max(jnp.abs(out - ref))})")

    print("KERNEL_OK")
</pallas_src>

<mosaic_0001>
module attributes {stable_mosaic.version = 11 : i64} {
  func.func @netvlad_kernel(%arg0: i32, %arg1: memref<24x128xf32, #tpu.memory_space<vmem>>, %arg2: memref<128x128xbf16, #tpu.memory_space<vmem>>, %arg3: memref<1x128xf32, #tpu.memory_space<vmem>>, %arg4: memref<128x128xbf16, #tpu.memory_space<vmem>>, %arg5: memref<24x128xf32, #tpu.memory_space<vmem>>) attributes {dimension_semantics = [#tpu.dimension_semantics<parallel>], iteration_bounds = array<i64: 1>, scalar_prefetch = 0 : i64, scratch_operands = 0 : i64, tpu.core_type = #tpu.core_type<tc>, window_params = [{transform_indices = @transform_0, window_bounds = array<i64: 24, 128>}, {pipeline_mode = #tpu.pipeline_mode<synchronous>, transform_indices = @transform_1, window_bounds = array<i64: 128, 128>}, {pipeline_mode = #tpu.pipeline_mode<synchronous>, transform_indices = @transform_2, window_bounds = array<i64: 1, 128>}, {pipeline_mode = #tpu.pipeline_mode<synchronous>, transform_indices = @transform_3, window_bounds = array<i64: 128, 128>}, {transform_indices = @transform_4, window_bounds = array<i64: 24, 128>}]} {
    %c0 = arith.constant 0 : index
    %c0_0 = arith.constant 0 : index
    %0 = vector.load %arg1[%c0, %c0_0] : memref<24x128xf32, #tpu.memory_space<vmem>>, vector<24x128xf32>
    %1 = arith.truncf %0 : vector<24x128xf32> to vector<24x128xbf16>
    %c0_1 = arith.constant 0 : index
    %c0_2 = arith.constant 0 : index
    %2 = vector.load %arg2[%c0_1, %c0_2] : memref<128x128xbf16, #tpu.memory_space<vmem>>, vector<128x128xbf16>
    %cst = arith.constant dense<0.000000e+00> : vector<24x128xf32>
    %3 = tpu.matmul %1, %2, %cst {dimension_numbers = #tpu.dot_dimension_numbers<[1], [0], [0], [1], [0, 0, 1, 1], [], []>} : vector<24x128xbf16>, vector<128x128xbf16>, vector<24x128xf32> -> vector<24x128xf32>
    %c0_3 = arith.constant 0 : index
    %c0_4 = arith.constant 0 : index
    %4 = vector.load %arg3[%c0_3, %c0_4] : memref<1x128xf32, #tpu.memory_space<vmem>>, vector<1x128xf32>
    %5 = vector.broadcast %4 : vector<1x128xf32> to vector<24x128xf32>
    %6 = arith.addf %3, %5 : vector<24x128xf32>
    %cst_5 = arith.constant dense<0xFF800000> : vector<24xf32>
    %7 = vector.multi_reduction <maximumf>, %6, %cst_5 [1] : vector<24x128xf32> to vector<24xf32>
    %8 = vector.shape_cast %7 : vector<24xf32> to vector<24x1xf32>
    %9 = vector.broadcast %8 : vector<24x1xf32> to vector<24x128xf32>
    %10 = arith.subf %6, %9 : vector<24x128xf32>
    %11 = math.exp %10 : vector<24x128xf32>
    %cst_6 = arith.constant dense<0.000000e+00> : vector<24xf32>
    %12 = vector.multi_reduction <add>, %11, %cst_6 [1] : vector<24x128xf32> to vector<24xf32>
    %13 = vector.shape_cast %12 : vector<24xf32> to vector<24x1xf32>
    %14 = tpu.reciprocal %13 {approx = true} : vector<24x1xf32> -> vector<24x1xf32>
    %15 = arith.truncf %11 : vector<24x128xf32> to vector<24x128xbf16>
    %c0_7 = arith.constant 0 : index
    %c0_8 = arith.constant 0 : index
    %16 = vector.load %arg4[%c0_7, %c0_8] : memref<128x128xbf16, #tpu.memory_space<vmem>>, vector<128x128xbf16>
    %cst_9 = arith.constant dense<0.000000e+00> : vector<24x128xf32>
    %17 = tpu.matmul %15, %16, %cst_9 {dimension_numbers = #tpu.dot_dimension_numbers<[1], [0], [0], [1], [0, 0, 1, 1], [], []>} : vector<24x128xbf16>, vector<128x128xbf16>, vector<24x128xf32> -> vector<24x128xf32>
    %18 = vector.broadcast %14 : vector<24x1xf32> to vector<24x128xf32>
    %19 = arith.mulf %18, %17 : vector<24x128xf32>
    %20 = arith.subf %0, %19 : vector<24x128xf32>
    %21 = arith.mulf %20, %20 : vector<24x128xf32>
    %cst_10 = arith.constant dense<0.000000e+00> : vector<24xf32>
    %22 = vector.multi_reduction <add>, %21, %cst_10 [1] : vector<24x128xf32> to vector<24xf32>
    %23 = vector.shape_cast %22 : vector<24xf32> to vector<24x1xf32>
    %cst_11 = arith.constant 1.000000e-24 : f32
    %24 = vector.broadcast %cst_11 : f32 to vector<24x1xf32>
    %25 = arith.maximumf %23, %24 : vector<24x1xf32>
    %26 = math.rsqrt %25 : vector<24x1xf32>
    %27 = vector.broadcast %26 : vector<24x1xf32> to vector<24x128xf32>
    %28 = arith.mulf %20, %27 : vector<24x128xf32>
    %c0_12 = arith.constant 0 : index
    %c0_13 = arith.constant 0 : index
    %29 = vector.load %arg5[%c0_12, %c0_13] : memref<24x128xf32, #tpu.memory_space<vmem>>, vector<24x128xf32>
    tpu.vector_store %arg5[%c0_12, %c0_13], %28 {strides = array<i32>} : memref<24x128xf32, #tpu.memory_space<vmem>>, vector<24x128xf32>,
    return
  }
  func.func @transform_0(%arg0: i32) -> (i32, i32) {
    %c0_i32 = arith.constant 0 : i32
    %c0_i32_0 = arith.constant 0 : i32
    return %arg0, %c0_i32 : i32, i32
  }
  func.func @transform_1(%arg0: i32) -> (i32, i32) {
    %c0_i32 = arith.constant 0 : i32
    %c0_i32_0 = arith.constant 0 : i32
    %c0_i32_1 = arith.constant 0 : i32
    return %c0_i32, %c0_i32_0 : i32, i32
  }
  func.func @transform_2(%arg0: i32) -> (i32, i32) {
    %c0_i32 = arith.constant 0 : i32
    %c0_i32_0 = arith.constant 0 : i32
    %c0_i32_1 = arith.constant 0 : i32
    return %c0_i32, %c0_i32_0 : i32, i32
  }
  func.func @transform_3(%arg0: i32) -> (i32, i32) {
    %c0_i32 = arith.constant 0 : i32
    %c0_i32_0 = arith.constant 0 : i32
    %c0_i32_1 = arith.constant 0 : i32
    return %c0_i32, %c0_i32_0 : i32, i32
  }
  func.func @transform_4(%arg0: i32) -> (i32, i32) {
    %c0_i32 = arith.constant 0 : i32
    %c0_i32_0 = arith.constant 0 : i32
    return %arg0, %c0_i32 : i32, i32
  }
}

</mosaic_0001>

<llo_original>
// kernel: tpu_custom_call.1
$region0: #{tpu_custom_call.1}
  #allocation0 [shape = 'u32[]', space=smem, size = 0x4, offset = 0x4, fixed_abs, tag = 'smem constant byte address 0x4 - core index']
  #allocation1 [shape = 'u32[144,128]{1,0:T(1,128)}', space=vmem, size = 0x12000, scoped, tag = 'internal scratch']
  %s0 = inlined_call_operand.hbm [shape: f32[24,128], index: 0, kind: input, shape index: {}]
  %s1 = inlined_call_operand.hbm [shape: bf16[128,128], index: 1, kind: input, shape index: {}]
  %s2 = inlined_call_operand.vmem [shape: f32[1,128], index: 2, kind: input, shape index: {}]
  %s3 = inlined_call_operand.hbm [shape: bf16[128,128], index: 3, kind: input, shape index: {}]
  %s4 = inlined_call_operand.hbm [shape: f32[24,128], index: 4, kind: output, shape index: {}]
  %s5 = sld [smem:[#allocation0]]
  $region38: #{tpu_custom_call.1} parent=0
    _
  %s7 = ssub.s32 1, %s5
  %s8 = scalar_select 0, %s7, %s5
  $region1: #{tpu_custom_call.1} parent=0
    #allocation2 [shape = 'u8[12288]{0}', space=vmem, size = 0x3000, scoped, tag = 'input window, operand 0, single buffered']
    #allocation3 [shape = 's32[1]{0}', space=sflag, size = 0x4, scoped, tag = 'scoped memory for tpu_custom_call.1']
    #allocation4 [shape = 's32[1]{0}', space=sflag, size = 0x4, scoped, tag = 'scoped memory for tpu_custom_call.1']
    #allocation5 [shape = 'u8[32768]{0}', space=vmem, size = 0x8000, scoped, tag = 'input window, operand 1, single buffered']
    #allocation6 [shape = 's32[1]{0}', space=sflag, size = 0x4, scoped, tag = 'scoped memory for tpu_custom_call.1']
    #allocation7 [shape = 'u8[32768]{0}', space=vmem, size = 0x8000, scoped, tag = 'input window, operand 3, single buffered']
    #allocation8 [shape = 'u8[12288]{0}', space=vmem, size = 0x3000, scoped, tag = 'output window, operand 0, single buffered']
    %9 = vsyncpa [#allocation3], 0
    %10 = vsyncpa [#allocation6], 0
    %11 = vsyncpa [#allocation4], 0
    // Predicated region
    $region2: #{tpu_custom_call.1} parent=1 // pred_check
      _
    $region3: #{tpu_custom_call.1} parent=1 // pred_check_branch
      %13 = sbr.rel (0) target = $region5
    $region4: #{tpu_custom_call.1} parent=1 // pred_region
      %s15 = ssub.s32 384, 384
      %16 = vsyncadd [#allocation3], %s15
      %s17 = sshll.u32 [#allocation2], 4
      %s18 = int_to_ptr.vmem [resolvable:$true] %s17
      %23 = dma.hbm_to_vmem [thread:$0]  %s0, 384, %s18, [#allocation3], 128, 128, 8
    $region5: #{tpu_custom_call.1} parent=1 // pred_fallthru
      _
    // Predicated region
    $region6: #{tpu_custom_call.1} parent=1 // pred_check
      _
    $region7: #{tpu_custom_call.1} parent=1 // pred_check_branch
      %25 = sbr.rel (0) target = $region9
    $region8: #{tpu_custom_call.1} parent=1 // pred_region
      %s27 = ssub.s32 1024, 1024
      %28 = vsyncadd [#allocation6], %s27
      %s29 = sshll.u32 [#allocation5], 4
      %s30 = int_to_ptr.vmem [resolvable:$true] %s29
      %35 = dma.hbm_to_vmem [thread:$0]  %s1, 1024, %s30, [#allocation6], 64, 64, 4
    $region9: #{tpu_custom_call.1} parent=1 // pred_fallthru
      _
    // Predicated region
    $region10: #{tpu_custom_call.1} parent=1 // pred_check
      _
    $region11: #{tpu_custom_call.1} parent=1 // pred_check_branch
      %37 = sbr.rel (0) target = $region13
    $region12: #{tpu_custom_call.1} parent=1 // pred_region
      _
    $region13: #{tpu_custom_call.1} parent=1 // pred_fallthru
      _
    // Predicated region
    $region14: #{tpu_custom_call.1} parent=1 // pred_check
      _
    $region15: #{tpu_custom_call.1} parent=1 // pred_check_branch
      %39 = sbr.rel (0) target = $region17
    $region16: #{tpu_custom_call.1} parent=1 // pred_region
      %s41 = ssub.s32 1024, 1024
      %42 = vsyncadd [#allocation6], %s41
      %s43 = sshll.u32 [#allocation7], 4
      %s44 = int_to_ptr.vmem [resolvable:$true] %s43
      %49 = dma.hbm_to_vmem [thread:$0]  %s3, 1024, %s44, [#allocation6], 64, 64, 4
    $region17: #{tpu_custom_call.1} parent=1 // pred_fallthru
      _
    // Predicated region
    $region18: #{tpu_custom_call.1} parent=1 // pred_check
      _
    $region19: #{tpu_custom_call.1} parent=1 // pred_check_branch
      %51 = sbr.rel (0) target = $region21
    $region20: #{tpu_custom_call.1} parent=1 // pred_region
      %52 = dma.done [#allocation3], 384
    $region21: #{tpu_custom_call.1} parent=1 // pred_fallthru
      _
    // Predicated region
    $region22: #{tpu_custom_call.1} parent=1 // pred_check
      _
    $region23: #{tpu_custom_call.1} parent=1 // pred_check_branch
      %54 = sbr.rel (0) target = $region25
    $region24: #{tpu_custom_call.1} parent=1 // pred_region
      %55 = dma.done [#allocation6], 1024
    $region25: #{tpu_custom_call.1} parent=1 // pred_fallthru
      _
    // Predicated region
    $region26: #{tpu_custom_call.1} parent=1 // pred_check
      _
    $region27: #{tpu_custom_call.1} parent=1 // pred_check_branch
      %57 = sbr.rel (0) target = $region29
    $region28: #{tpu_custom_call.1} parent=1 // pred_region
      %58 = dma.done [#allocation6], 1024
    $region29: #{tpu_custom_call.1} parent=1 // pred_fallthru
      _
    %v60 = vld [vmem:[#allocation2] sm:$0xff]
    %v61 = vld [vmem:[#allocation2 + $0x8] sm:$0xff]
    %v62 = vld [vmem:[#allocation2 + $0x10] sm:$0xff]
    %v63 = vpack.c.bf16 %v61, %v60
    %v64 = vpack.c.bf16 %v62, %v62
    %v65 = vld [vmem:[#allocation5] sm:$0xf]
    %v66 = vld [vmem:[#allocation5 + $0x4] sm:$0xf]
    %v67 = vld [vmem:[#allocation5 + $0x8] sm:$0xf]
    %v68 = vld [vmem:[#allocation5 + $0xc] sm:$0xf]
    %v69 = vld [vmem:[#allocation5 + $0x10] sm:$0xf]
    %v70 = vld [vmem:[#allocation5 + $0x14] sm:$0xf]
    %v71 = vld [vmem:[#allocation5 + $0x18] sm:$0xf]
    %v72 = vld [vmem:[#allocation5 + $0x1c] sm:$0xf]
    %v73 = vld [vmem:[#allocation5 + $0x20] sm:$0xf]
    %v74 = vld [vmem:[#allocation5 + $0x24] sm:$0xf]
    %v75 = vld [vmem:[#allocation5 + $0x28] sm:$0xf]
    %v76 = vld [vmem:[#allocation5 + $0x2c] sm:$0xf]
    %v77 = vld [vmem:[#allocation5 + $0x30] sm:$0xf]
    %v78 = vld [vmem:[#allocation5 + $0x34] sm:$0xf]
    %v79 = vld [vmem:[#allocation5 + $0x38] sm:$0xf]
    %v80 = vld [vmem:[#allocation5 + $0x3c] sm:$0xf]
    %v81 = vld [vmem:[%s2] sm:$0x1]
    %v83 = vlaneseq
    %v84 = vshrl.u32 %v83, 7
    %v85 = vsub.s32 0, %v84
    %v86 = vrot.slane %v81, %v85
    %v104 = vunpack.c.l.b16 %v65
    %v105 = vunpack.c.l.b16 %v66
    %v106 = vunpack.c.l.b16 %v67
    %v107 = vunpack.c.l.b16 %v68
    %v108 = vunpack.c.l.b16 %v69
    %v109 = vunpack.c.l.b16 %v70
    %v110 = vunpack.c.l.b16 %v71
    %v111 = vunpack.c.l.b16 %v72
    %v112 = vunpack.c.l.b16 %v73
    %v113 = vunpack.c.l.b16 %v74
    %v114 = vunpack.c.l.b16 %v75
    %v115 = vunpack.c.l.b16 %v76
    %v116 = vunpack.c.l.b16 %v77
    %v117 = vunpack.c.l.b16 %v78
    %v118 = vunpack.c.l.b16 %v79
    %v119 = vunpack.c.l.b16 %v80
    %v120 = vpack.c.b16 %v105, %v104
    %v121 = vpack.c.b16 %v107, %v106
    %v122 = vpack.c.b16 %v109, %v108
    %v123 = vpack.c.b16 %v111, %v110
    %v124 = vpack.c.b16 %v113, %v112
    %v125 = vpack.c.b16 %v115, %v114
    %v126 = vpack.c.b16 %v117, %v116
    %v127 = vpack.c.b16 %v119, %v118
    %136 = vmatprep.subr.bf16.mxu0 0
    %137 = vmatpush1.bf16.msra.mxu0 %v127
    %138 = vmatprep.subr.bf16.mxu0 0
    %139 = vmatpush1.bf16.msra.mxu0 %v126
    %140 = vmatprep.subr.bf16.mxu0 0
    %141 = vmatpush1.bf16.msra.mxu0 %v125
    %142 = vmatprep.subr.bf16.mxu0 0
    %143 = vmatpush1.bf16.msra.mxu0 %v124
    %144 = vmatprep.subr.bf16.mxu0 0
    %145 = vmatpush1.bf16.msra.mxu0 %v123
    %146 = vmatprep.subr.bf16.mxu0 0
    %147 = vmatpush1.bf16.msra.mxu0 %v122
    %148 = vmatprep.subr.bf16.mxu0 0
    %149 = vmatpush1.bf16.msra.mxu0 %v121
    %150 = vmatprep.subr.bf16.mxu0 0
    %151 = vmatpush1.bf16.msra.mxu0 %v120
    %152 = vmatprep.subr.bf16.mxu0 0
    %153 = vmatpush2.bf16.msra.mxu0 0
    %154 = vmatprep.subr.bf16.mxu0 0
    %155 = vmatpush2.bf16.msra.mxu0 0
    %156 = vmatprep.subr.bf16.mxu0 0
    %157 = vmatpush2.bf16.msra.mxu0 0
    %158 = vmatprep.subr.bf16.mxu0 0
    %159 = vmatpush2.bf16.msra.mxu0 0
    %160 = vmatprep.subr.bf16.mxu0 0
    %161 = vmatpush2.bf16.msra.mxu0 0
    %162 = vmatprep.subr.bf16.mxu0 0
    %163 = vmatpush2.bf16.msra.mxu0 0
    %164 = vmatprep.subr.bf16.mxu0 0
    %165 = vmatpush2.bf16.msra.mxu0 0
    %166 = vmatprep.subr.bf16.mxu0 0
    %167 = vmatpush2.bf16.msra.mxu0 0
    %168 = vmatprep.mubr.bf16.mxu0 0
    %169 = vmatmul.mubr.bf16.gmra.mxu0 %v63
    %v170 = vpop.f32.mrf.mxu0
    %v171 = vadd.f32 %v86, %v170
    %v172 = vpop.f32.mrf.mxu0
    %v173 = vpop.f32.mrf.mxu0
    %v174 = vadd.f32 %v86, %v173
    %v175 = vpop.f32.mrf.mxu0
    %176 = vmatprep.mubr.bf16.mxu0 0
    %177 = vmatmul.mubr.bf16.gmra.mxu0 %v64
    %v178 = vpop.f32.mrf.mxu0
    %v179 = vadd.f32 %v86, %v178
    %v180 = vpop.f32.mrf.mxu0
    %v181 = vpop.f32.mrf.mxu0
    %v182 = vpop.f32.mrf.mxu0
    %183 = vdwg.mxu0
    %184 = vmax.xlane.f32.xlu0 %v171
    %v185 = vpop.xlane.xlu0 %184
    %186 = vmax.xlane.f32.xlu0 %v174
    %v187 = vpop.xlane.xlu0 %186
    %188 = vmax.xlane.f32.xlu0 %v179
    %v189 = vpop.xlane.xlu0 %188
    %v190 = vsub.f32 %v171, %v185
    %v191 = vsub.f32 %v174, %v187
    %v192 = vsub.f32 %v179, %v189
    %v193 = vmul.f32 %v190, 1.442695
    %v194 = vpow.pop %v193
    %v195 = vmul.f32 %v191, 1.442695
    %v196 = vpow.pop %v195
    %v197 = vmul.f32 %v192, 1.442695
    %v198 = vpow.pop %v197
    %199 = vadd.xlane.f32.xlu0 %v194
    %v200 = vpop.xlane.xlu0 %199
    %201 = vadd.xlane.f32.xlu0 %v196
    %v202 = vpop.xlane.xlu0 %201
    %203 = vadd.xlane.f32.xlu0 %v198
    %v204 = vpop.xlane.xlu0 %203
    %v205 = vrcp.pop %v200
    %v206 = vrcp.pop %v202
    %v207 = vrcp.pop %v204
    %v208 = vpack.c.bf16 %v196, %v194
    %v209 = vpack.c.bf16 %v198, %v198
    %v210 = vld [vmem:[#allocation7] sm:$0xf]
    %v211 = vld [vmem:[#allocation7 + $0x4] sm:$0xf]
    %v212 = vld [vmem:[#allocation7 + $0x8] sm:$0xf]
    %v213 = vld [vmem:[#allocation7 + $0xc] sm:$0xf]
    %v214 = vld [vmem:[#allocation7 + $0x10] sm:$0xf]
    %v215 = vld [vmem:[#allocation7 + $0x14] sm:$0xf]
    %v216 = vld [vmem:[#allocation7 + $0x18] sm:$0xf]
    %v217 = vld [vmem:[#allocation7 + $0x1c] sm:$0xf]
    %v218 = vld [vmem:[#allocation7 + $0x20] sm:$0xf]
    %v219 = vld [vmem:[#allocation7 + $0x24] sm:$0xf]
    %v220 = vld [vmem:[#allocation7 + $0x28] sm:$0xf]
    %v221 = vld [vmem:[#allocation7 + $0x2c] sm:$0xf]
    %v222 = vld [vmem:[#allocation7 + $0x30] sm:$0xf]
    %v223 = vld [vmem:[#allocation7 + $0x34] sm:$0xf]
    %v224 = vld [vmem:[#allocation7 + $0x38] sm:$0xf]
    %v225 = vld [vmem:[#allocation7 + $0x3c] sm:$0xf]
    %v242 = vunpack.c.l.b16 %v210
    %v243 = vunpack.c.l.b16 %v211
    %v244 = vunpack.c.l.b16 %v212
    %v245 = vunpack.c.l.b16 %v213
    %v246 = vunpack.c.l.b16 %v214
    %v247 = vunpack.c.l.b16 %v215
    %v248 = vunpack.c.l.b16 %v216
    %v249 = vunpack.c.l.b16 %v217
    %v250 = vunpack.c.l.b16 %v218
    %v251 = vunpack.c.l.b16 %v219
    %v252 = vunpack.c.l.b16 %v220
    %v253 = vunpack.c.l.b16 %v221
    %v254 = vunpack.c.l.b16 %v222
    %v255 = vunpack.c.l.b16 %v223
    %v256 = vunpack.c.l.b16 %v224
    %v257 = vunpack.c.l.b16 %v225
    %v258 = vpack.c.b16 %v243, %v242
    %v259 = vpack.c.b16 %v245, %v244
    %v260 = vpack.c.b16 %v247, %v246
    %v261 = vpack.c.b16 %v249, %v248
    %v262 = vpack.c.b16 %v251, %v250
    %v263 = vpack.c.b16 %v253, %v252
    %v264 = vpack.c.b16 %v255, %v254
    %v265 = vpack.c.b16 %v257, %v256
    %274 = vmatprep.subr.bf16.mxu0 0
    %275 = vmatpush1.bf16.msra.mxu0 %v265
    %276 = vmatprep.subr.bf16.mxu0 0
    %277 = vmatpush1.bf16.msra.mxu0 %v264
    %278 = vmatprep.subr.bf16.mxu0 0
    %279 = vmatpush1.bf16.msra.mxu0 %v263
    %280 = vmatprep.subr.bf16.mxu0 0
    %281 = vmatpush1.bf16.msra.mxu0 %v262
    %282 = vmatprep.subr.bf16.mxu0 0
    %283 = vmatpush1.bf16.msra.mxu0 %v261
    %284 = vmatprep.subr.bf16.mxu0 0
    %285 = vmatpush1.bf16.msra.mxu0 %v260
    %286 = vmatprep.subr.bf16.mxu0 0
    %287 = vmatpush1.bf16.msra.mxu0 %v259
    %288 = vmatprep.subr.bf16.mxu0 0
    %289 = vmatpush1.bf16.msra.mxu0 %v258
    %290 = vmatprep.subr.bf16.mxu0 0
    %291 = vmatpush2.bf16.msra.mxu0 0
    %292 = vmatprep.subr.bf16.mxu0 0
    %293 = vmatpush2.bf16.msra.mxu0 0
    %294 = vmatprep.subr.bf16.mxu0 0
    %295 = vmatpush2.bf16.msra.mxu0 0
    %296 = vmatprep.subr.bf16.mxu0 0
    %297 = vmatpush2.bf16.msra.mxu0 0
    %298 = vmatprep.subr.bf16.mxu0 0
    %299 = vmatpush2.bf16.msra.mxu0 0
    %300 = vmatprep.subr.bf16.mxu0 0
    %301 = vmatpush2.bf16.msra.mxu0 0
    %302 = vmatprep.subr.bf16.mxu0 0
    %303 = vmatpush2.bf16.msra.mxu0 0
    %304 = vmatprep.subr.bf16.mxu0 0
    %305 = vmatpush2.bf16.msra.mxu0 0
    %306 = vmatprep.mubr.bf16.mxu0 0
    %307 = vmatmul.mubr.bf16.gmra.mxu0 %v208
    %v308 = vpop.f32.mrf.mxu0
    %v309 = vadd.f32 0.0, %v308
    %v310 = vpop.f32.mrf.mxu0
    %v311 = vpop.f32.mrf.mxu0
    %v312 = vadd.f32 0.0, %v311
    %v313 = vpop.f32.mrf.mxu0
    %314 = vmatprep.mubr.bf16.mxu0 0
    %315 = vmatmul.mubr.bf16.gmra.mxu0 %v209
    %v316 = vpop.f32.mrf.mxu0
    %v317 = vadd.f32 0.0, %v316
    %v318 = vpop.f32.mrf.mxu0
    %v319 = vpop.f32.mrf.mxu0
    %v320 = vpop.f32.mrf.mxu0
    %321 = vdwg.mxu0
    %v322 = vmul.f32 %v205, %v309
    %v323 = vmul.f32 %v206, %v312
    %v324 = vmul.f32 %v207, %v317
    %v325 = vsub.f32 %v60, %v322
    %v326 = vsub.f32 %v61, %v323
    %v327 = vsub.f32 %v62, %v324
    %v328 = vmul.f32 %v325, %v325
    %v329 = vmul.f32 %v326, %v326
    %v330 = vmul.f32 %v327, %v327
    %331 = vadd.xlane.f32.xlu0 %v328
    %v332 = vpop.xlane.xlu0 %331
    %333 = vadd.xlane.f32.xlu0 %v329
    %v334 = vpop.xlane.xlu0 %333
    %335 = vadd.xlane.f32.xlu0 %v330
    %v336 = vpop.xlane.xlu0 %335
    %v337 = vmax.f32 %v332, 1e-24
    %v338 = vmax.f32 %v334, 1e-24
    %v339 = vmax.f32 %v336, 1e-24
    %v340 = vrsqrt.pop %v337
    %v341 = vrsqrt.pop %v338
    %v342 = vrsqrt.pop %v339
    %v343 = vmul.f32 %v325, %v340
    %v344 = vmul.f32 %v326, %v341
    %v345 = vmul.f32 %v327, %v342
    %346 = vst [vmem:[#allocation8] sm:$0xff] %v343
    %347 = vst [vmem:[#allocation8 + $0x8] sm:$0xff] %v344
    %348 = vst [vmem:[#allocation8 + $0x10] sm:$0xff] %v345
    // Predicated region
    $region30: #{tpu_custom_call.1} parent=1 // pred_check
      _
    $region31: #{tpu_custom_call.1} parent=1 // pred_check_branch
      %350 = sbr.rel (0) target = $region33
    $region32: #{tpu_custom_call.1} parent=1 // pred_region
      %s352 = ssub.s32 384, 384
      %353 = vsyncadd [#allocation4], %s352
      %s354 = sshll.u32 [#allocation8], 4
      %s355 = int_to_ptr.vmem [resolvable:$true] %s354
      %360 = dma.vmem_to_hbm [thread:$0]  %s355, 384, %s4, [#allocation4], 128, 128, 8
    $region33: #{tpu_custom_call.1} parent=1 // pred_fallthru
      _
    // Predicated region
    $region34: #{tpu_custom_call.1} parent=1 // pred_check
      _
    $region35: #{tpu_custom_call.1} parent=1 // pred_check_branch
      %362 = sbr.rel (0) target = $region37
    $region36: #{tpu_custom_call.1} parent=1 // pred_region
      %363 = dma.done [#allocation4], 384
    $region37: #{tpu_custom_call.1} parent=1 // pred_fallthru
      _
    %364 = vsyncpa [#allocation3], 1
    %365 = vsyncpa [#allocation6], 1
    %366 = vsyncpa [#allocation4], 1

</llo_original>
